<compile_context>
chip_gen: v6e
topology: v6e:2x2x1
jax: 0.10.0
libtpu: 0.0.40
codegen_flags: <defaults>
</compile_context>

<pallas_src>
import functools

import jax
import jax.numpy as jnp
from jax.experimental import pallas as pl
from jax.experimental.pallas import tpu as pltpu


def _rmsnorm_kernel(x_ref, w_ref, o_ref, *, eps, inv_h, lowp_scale):
    # x_ref: (TR, Hp) tile of rows; w_ref: (1, Hp).
    x = x_ref[...]
    xf = x.astype(jnp.float32)
    ms = jnp.sum(xf * xf, axis=-1, keepdims=True) * inv_h   # mean(x*x), (TR,1) f32
    inv = jax.lax.rsqrt(ms + eps)                            # (TR,1) f32
    if lowp_scale:
        # bf16/f16 elementwise scale (v6e/v7x): reduction above stays f32, but
        # the two full-tile multiplies stay packed in the input dtype.
        o_ref[...] = ((x * inv.astype(x.dtype)) * w_ref[...]).astype(o_ref.dtype)
    else:
        o_ref[...] = (w_ref[...] * (xf * inv)).astype(o_ref.dtype)


def _row_align(dtype):
    # Sublane packing: 8 rows for 32-bit, 16 for bf16/f16, 32 for 8-bit dtypes.
    itemsize = jnp.dtype(dtype).itemsize
    return max(8, 32 // itemsize)


def _vmem_capacity_bytes():
    # Per-TensorCore VMEM; fall back to the smallest (v7x, 64 MiB) if the
    # query is unavailable so the sizing stays safe on every generation.
    try:
        return int(pltpu.get_tpu_info().vmem_capacity_bytes)
    except Exception:
        return 64 * 1024 * 1024


def _pick_row_tile(rows, hidden_p, dtype, budget_bytes, max_tile):
    """Largest aligned row tile fitting the VMEM budget, with enough grid steps."""
    align = _row_align(dtype)
    itemsize = jnp.dtype(dtype).itemsize
    r_al = pl.cdiv(rows, align) * align

    # Per-row VMEM cost of one grid step:
    #   double-buffered in + out pipeline tiles:               4 * Hp * itemsize
    #   in-kernel f32 temporaries (x.astype(f32), x*x, scale): ~2 * Hp * 4
    per_row_vmem = hidden_p * itemsize * 4 + hidden_p * 4 * 2

    t = (budget_bytes // max(per_row_vmem, 1)) // align * align
    t = min(t, max_tile, r_al)
    t = max(align, (t // align) * align)

    # Prefer >= 8 grid steps (>= 2 per TensorCore on v7x + room for
    # prefetch/writeback overlap), but never shrink a step below ~1 MiB of
    # input traffic.
    desired_steps = 8
    min_step_bytes = 1 << 20
    min_rows = pl.cdiv(max(align, min_step_bytes // max(hidden_p * itemsize, 1)),
                       align) * align
    t_split = pl.cdiv(pl.cdiv(r_al, desired_steps), align) * align
    t = min(t, max(t_split, min(min_rows, t)))
    return max(align, t)


def rmsnorm(x, weight, eps=1e-6, *,
            vmem_budget_bytes=None,    # per-step pipeline+scratch budget (auto)
            vmem_limit_bytes=None,     # scoped-VMEM limit for Mosaic (auto)
            max_row_tile=8192,
            lowp_scale=None):          # None -> auto (bf16/f16 inputs)
    """x: [..., H]  weight: [H]  -> same shape/dtype as x (PyTorch RMSNorm)."""
    orig_shape = x.shape
    H = orig_shape[-1]
    x2 = x.reshape(-1, H)
    R = x2.shape[0]

    # Generation-aware VMEM sizing (v7x: 64 MiB/core, v5e/v6e: 128 MiB).
    cap = _vmem_capacity_bytes()
    if vmem_limit_bytes is None:
        vmem_limit_bytes = int(cap * 0.85)
    if vmem_budget_bytes is None:
        vmem_budget_bytes = int(cap * 0.40)

    if lowp_scale is None:
        lowp_scale = x.dtype in (jnp.bfloat16, jnp.float16)

    # Lane-dense hidden axis: pad H to a multiple of 128 only when needed so
    # output stores are unmasked full-lane vst. Padded columns are zero => no
    # effect on the row mean (we divide by the original H); sliced off after.
    H_pad = pl.cdiv(H, 128) * 128
    if H_pad != H:
        x2 = jnp.pad(x2, ((0, 0), (0, H_pad - H)))
        weight = jnp.pad(weight, (0, H_pad - H))

    w_dtype = x.dtype if lowp_scale else jnp.float32
    w2 = weight.astype(w_dtype).reshape(1, H_pad)

    row_tile = _pick_row_tile(R, H_pad, x.dtype, vmem_budget_bytes, max_row_tile)
    grid = (pl.cdiv(R, row_tile),)   # ragged rows -> partial last block, no copies

    kernel = functools.partial(_rmsnorm_kernel, eps=float(eps),
                               inv_h=1.0 / float(H), lowp_scale=lowp_scale)

    out = pl.pallas_call(
        kernel,
        out_shape=jax.ShapeDtypeStruct((R, H_pad), x.dtype),
        grid_spec=pltpu.PrefetchScalarGridSpec(
            num_scalar_prefetch=0,
            grid=grid,
            in_specs=[
                pl.BlockSpec((row_tile, H_pad), lambda i: (i, 0)),
                pl.BlockSpec((1, H_pad), lambda i: (0, 0)),
            ],
            out_specs=pl.BlockSpec((row_tile, H_pad), lambda i: (i, 0)),
        ),
        compiler_params=pltpu.CompilerParams(
            dimension_semantics=("parallel",),
            vmem_limit_bytes=vmem_limit_bytes,
        ),
    )(x2, w2)

    if H_pad != H:
        out = out[:, :H]
    return out.reshape(orig_shape)


def _ref_rmsnorm(x, w, eps=1e-6):
    xf = x.astype(jnp.float32)
    var = jnp.mean(xf * xf, axis=-1, keepdims=True)
    return (w.astype(jnp.float32) * (xf * jax.lax.rsqrt(var + eps))).astype(x.dtype)


if __name__ == "__main__":
    key = jax.random.PRNGKey(0)
    batch, seq, hidden = 2, 8, 32
    x = jax.random.normal(key, (batch, seq, hidden), dtype=jnp.float32)
    weight = jnp.ones((hidden,), dtype=jnp.float32)   # nn.Parameter(torch.ones(H))

    y = rmsnorm(x, weight, eps=1e-6)
    jax.block_until_ready(y)
    assert y.shape == x.shape and y.dtype == x.dtype
    assert jnp.allclose(y, _ref_rmsnorm(x, weight), atol=1e-5, rtol=1e-5)

    # Ragged rows (111) + multiple grid steps with a partial last block,
    # H % 128 == 0 path (no hidden padding, no row padding anywhere).
    x2 = jax.random.normal(jax.random.PRNGKey(1), (3, 37, 256), dtype=jnp.float32)
    w2 = jax.random.normal(jax.random.PRNGKey(2), (256,), dtype=jnp.float32)
    y2 = rmsnorm(x2, w2, eps=1e-6, max_row_tile=48)
    jax.block_until_ready(y2)
    assert jnp.allclose(y2, _ref_rmsnorm(x2, w2), atol=1e-5, rtol=1e-5)

    # bf16 path: f32 accumulation for the reduction, bf16 elementwise scale.
    x3 = jax.random.normal(jax.random.PRNGKey(3), (4, 64, 256), dtype=jnp.bfloat16)
    w3 = (1.0 + 0.1 * jax.random.normal(jax.random.PRNGKey(4), (256,))
          ).astype(jnp.bfloat16)
    y3 = rmsnorm(x3, w3, eps=1e-6)
    jax.block_until_ready(y3)
    assert jnp.allclose(y3.astype(jnp.float32),
                        _ref_rmsnorm(x3, w3).astype(jnp.float32),
                        atol=5e-2, rtol=5e-2)

    print("KERNEL_OK")
</pallas_src>

<mosaic_0001>
module attributes {stable_mosaic.version = 11 : i64} {
  func.func @_rmsnorm_kernel(%arg0: i32, %arg1: memref<16x128xf32, #tpu.memory_space<vmem>>, %arg2: memref<1x128xf32, #tpu.memory_space<vmem>>, %arg3: memref<16x128xf32, #tpu.memory_space<vmem>>) attributes {dimension_semantics = [#tpu.dimension_semantics<parallel>], iteration_bounds = array<i64: 1>, scalar_prefetch = 0 : i64, scratch_operands = 0 : i64, tpu.core_type = #tpu.core_type<tc>, window_params = [{transform_indices = @transform_0, window_bounds = array<i64: 16, 128>}, {pipeline_mode = #tpu.pipeline_mode<synchronous>, transform_indices = @transform_1, window_bounds = array<i64: 1, 128>}, {transform_indices = @transform_2, window_bounds = array<i64: 16, 128>}]} {
    %c0 = arith.constant 0 : index
    %c0_0 = arith.constant 0 : index
    %0 = vector.load %arg1[%c0, %c0_0] : memref<16x128xf32, #tpu.memory_space<vmem>>, vector<16x128xf32>
    %1 = arith.mulf %0, %0 : vector<16x128xf32>
    %cst = arith.constant dense<0.000000e+00> : vector<16xf32>
    %2 = vector.multi_reduction <add>, %1, %cst [1] : vector<16x128xf32> to vector<16xf32>
    %3 = vector.shape_cast %2 : vector<16xf32> to vector<16x1xf32>
    %cst_1 = arith.constant 3.125000e-02 : f32
    %4 = vector.broadcast %cst_1 : f32 to vector<16x1xf32>
    %5 = arith.mulf %3, %4 : vector<16x1xf32>
    %cst_2 = arith.constant 9.99999997E-7 : f32
    %6 = vector.broadcast %cst_2 : f32 to vector<16x1xf32>
    %7 = arith.addf %5, %6 : vector<16x1xf32>
    %8 = math.rsqrt %7 : vector<16x1xf32>
    %c0_3 = arith.constant 0 : index
    %c0_4 = arith.constant 0 : index
    %9 = vector.load %arg2[%c0_3, %c0_4] : memref<1x128xf32, #tpu.memory_space<vmem>>, vector<1x128xf32>
    %10 = vector.broadcast %8 : vector<16x1xf32> to vector<16x128xf32>
    %11 = arith.mulf %0, %10 : vector<16x128xf32>
    %12 = vector.broadcast %9 : vector<1x128xf32> to vector<16x128xf32>
    %13 = arith.mulf %12, %11 : vector<16x128xf32>
    %c0_5 = arith.constant 0 : index
    %c0_6 = arith.constant 0 : index
    %14 = vector.load %arg3[%c0_5, %c0_6] : memref<16x128xf32, #tpu.memory_space<vmem>>, vector<16x128xf32>
    tpu.vector_store %arg3[%c0_5, %c0_6], %13 {strides = array<i32>} : memref<16x128xf32, #tpu.memory_space<vmem>>, vector<16x128xf32>,
    return
  }
  func.func @transform_0(%arg0: i32) -> (i32, i32) {
    %c0_i32 = arith.constant 0 : i32
    %c0_i32_0 = arith.constant 0 : i32
    return %arg0, %c0_i32 : i32, i32
  }
  func.func @transform_1(%arg0: i32) -> (i32, i32) {
    %c0_i32 = arith.constant 0 : i32
    %c0_i32_0 = arith.constant 0 : i32
    %c0_i32_1 = arith.constant 0 : i32
    return %c0_i32, %c0_i32_0 : i32, i32
  }
  func.func @transform_2(%arg0: i32) -> (i32, i32) {
    %c0_i32 = arith.constant 0 : i32
    %c0_i32_0 = arith.constant 0 : i32
    return %arg0, %c0_i32 : i32, i32
  }
}

</mosaic_0001>

<llo_original>
// kernel: tpu_custom_call.1
$region0: #{tpu_custom_call.1}
  #allocation0 [shape = 'u32[]', space=smem, size = 0x4, offset = 0x4, fixed_abs, tag = 'smem constant byte address 0x4 - core index']
  #allocation1 [shape = 'u32[144,128]{1,0:T(1,128)}', space=vmem, size = 0x12000, scoped, tag = 'internal scratch']
  %s0 = inlined_call_operand.hbm [shape: f32[16,128], index: 0, kind: input, shape index: {}]
  %s1 = inlined_call_operand.vmem [shape: f32[1,128], index: 1, kind: input, shape index: {}]
  %s2 = inlined_call_operand.hbm [shape: f32[16,128], index: 2, kind: output, shape index: {}]
  %s3 = sld [smem:[#allocation0]]
  $region22: #{tpu_custom_call.1} parent=0
    _
  %s5 = ssub.s32 1, %s3
  %s6 = scalar_select 0, %s5, %s3
  $region1: #{tpu_custom_call.1} parent=0
    #allocation2 [shape = 'u8[8192]{0}', space=vmem, size = 0x2000, scoped, tag = 'input window, operand 0, single buffered']
    #allocation3 [shape = 's32[1]{0}', space=sflag, size = 0x4, scoped, tag = 'scoped memory for tpu_custom_call.1']
    #allocation4 [shape = 's32[1]{0}', space=sflag, size = 0x4, scoped, tag = 'scoped memory for tpu_custom_call.1']
    #allocation5 [shape = 'u8[8192]{0}', space=vmem, size = 0x2000, scoped, tag = 'output window, operand 0, single buffered']
    %7 = vsyncpa [#allocation3], 0
    %8 = vsyncpa [#allocation4], 0
    // Predicated region
    $region2: #{tpu_custom_call.1} parent=1 // pred_check
      _
    $region3: #{tpu_custom_call.1} parent=1 // pred_check_branch
      %10 = sbr.rel (0) target = $region5
    $region4: #{tpu_custom_call.1} parent=1 // pred_region
      %s12 = ssub.s32 256, 256
      %13 = vsyncadd [#allocation3], %s12
      %s14 = sshll.u32 [#allocation2], 4
      %s15 = int_to_ptr.vmem [resolvable:$true] %s14
      %20 = dma.hbm_to_vmem [thread:$0]  %s0, 256, %s15, [#allocation3], 128, 128, 8
    $region5: #{tpu_custom_call.1} parent=1 // pred_fallthru
      _
    // Predicated region
    $region6: #{tpu_custom_call.1} parent=1 // pred_check
      _
    $region7: #{tpu_custom_call.1} parent=1 // pred_check_branch
      %22 = sbr.rel (0) target = $region9
    $region8: #{tpu_custom_call.1} parent=1 // pred_region
      _
    $region9: #{tpu_custom_call.1} parent=1 // pred_fallthru
      _
    // Predicated region
    $region10: #{tpu_custom_call.1} parent=1 // pred_check
      _
    $region11: #{tpu_custom_call.1} parent=1 // pred_check_branch
      %24 = sbr.rel (0) target = $region13
    $region12: #{tpu_custom_call.1} parent=1 // pred_region
      %25 = dma.done [#allocation3], 256
    $region13: #{tpu_custom_call.1} parent=1 // pred_fallthru
      _
    %v26 = vld [vmem:[#allocation2] sm:$0xff]
    %v27 = vld [vmem:[#allocation2 + $0x8] sm:$0xff]
    %v28 = vmul.f32 %v26, %v26
    %v29 = vmul.f32 %v27, %v27
    %30 = vadd.xlane.f32.xlu0 %v28
    %v31 = vpop.xlane.xlu0 %30
    %32 = vadd.xlane.f32.xlu0 %v29
    %v33 = vpop.xlane.xlu0 %32
    %v34 = vmul.f32 %v31, 0.03125
    %v35 = vmul.f32 %v33, 0.03125
    %v36 = vadd.f32 %v34, 1e-06
    %v37 = vadd.f32 %v35, 1e-06
    %v38 = vrsqrt.pop %v36
    %v39 = vrsqrt.pop %v37
    %v40 = vld [vmem:[%s1] sm:$0x1]
    %v41 = vmul.f32 %v26, %v38
    %v42 = vmul.f32 %v27, %v39
    %v44 = vlaneseq
    %v45 = vshrl.u32 %v44, 7
    %v46 = vsub.s32 0, %v45
    %v47 = vrot.slane %v40, %v46
    %v49 = vmul.f32 %v47, %v41
    %v50 = vmul.f32 %v47, %v42
    %51 = vst [vmem:[#allocation5] sm:$0xff] %v49
    %52 = vst [vmem:[#allocation5 + $0x8] sm:$0xff] %v50
    // Predicated region
    $region14: #{tpu_custom_call.1} parent=1 // pred_check
      _
    $region15: #{tpu_custom_call.1} parent=1 // pred_check_branch
      %54 = sbr.rel (0) target = $region17
    $region16: #{tpu_custom_call.1} parent=1 // pred_region
      %s56 = ssub.s32 256, 256
      %57 = vsyncadd [#allocation4], %s56
      %s58 = sshll.u32 [#allocation5], 4
      %s59 = int_to_ptr.vmem [resolvable:$true] %s58
      %64 = dma.vmem_to_hbm [thread:$0]  %s59, 256, %s2, [#allocation4], 128, 128, 8
    $region17: #{tpu_custom_call.1} parent=1 // pred_fallthru
      _
    // Predicated region
    $region18: #{tpu_custom_call.1} parent=1 // pred_check
      _
    $region19: #{tpu_custom_call.1} parent=1 // pred_check_branch
      %66 = sbr.rel (0) target = $region21
    $region20: #{tpu_custom_call.1} parent=1 // pred_region
      %67 = dma.done [#allocation4], 256
    $region21: #{tpu_custom_call.1} parent=1 // pred_fallthru
      _
    %68 = vsyncpa [#allocation3], 1
    %69 = vsyncpa [#allocation4], 1

</llo_original>
